<compile_context>
chip_gen: v5e
topology: v5e:2x2
jax: 0.10.0
libtpu: 0.0.40
codegen_flags: <defaults>
</compile_context>

<pallas_src>
import jax
import jax.numpy as jnp
from jax.experimental import pallas as pl
from jax.experimental.pallas import tpu as pltpu


def _linear_sigmoid_kernel(x_ref, w_ref, b_ref, o_ref):
    # x_ref: (TILE_N, 384), w_ref: (384, C), b_ref: (1, C), o_ref: (TILE_N, C)
    acc = jnp.dot(x_ref[...], w_ref[...], preferred_element_type=jnp.float32)
    acc = acc + b_ref[...]                      # (1, C) broadcasts over rows
    # sigmoid(z) = 0.5 * (tanh(z/2) + 1)  -> single EUP op, no divide chain
    o_ref[...] = (0.5 * (jnp.tanh(0.5 * acc) + 1.0)).astype(o_ref.dtype)


def _round_up(v, m):
    return ((v + m - 1) // m) * m


def mlp_forward(x, w3, b3, *, tile_n_max=2048, min_rows_for_pallas=64,
                cast_to_bf16=False):
    """Pallas equivalent of MLP.forward: returns (sigmoid(x @ w3 + b3), x)."""
    n, d_in = x.shape
    d_out = w3.shape[1]

    # Tiny inputs: the custom call + pipeline setup dominate -> plain XLA.
    if n < min_rows_for_pallas:
        return jax.nn.sigmoid(x @ w3 + b3), x

    x_in, w_in = x, w3
    if cast_to_bf16:
        # Opt-in bandwidth/MXU win (esp. v5e). Accumulation stays f32 in-kernel.
        x_in = x.astype(jnp.bfloat16)
        w_in = w3.astype(jnp.bfloat16)

    # Minimum sublane tile depends on the streamed dtype (f32: 8, bf16: 16).
    sub = 16 if x_in.dtype == jnp.bfloat16 else 8
    tile_n_max = _round_up(tile_n_max, sub)

    # Row tiling. No padding of x: the grid uses cdiv and Pallas handles the
    # ragged last block (OOB reads padded, OOB writes dropped).
    n_sub = _round_up(n, sub)
    if n_sub <= tile_n_max:
        tile_n = n_sub                     # single step
    else:
        steps = pl.cdiv(n, tile_n_max)
        steps = _round_up(steps, 2)        # even step count -> balanced on v7x's 2 TCs
        tile_n = _round_up(pl.cdiv(n, steps), sub)
    grid = (pl.cdiv(n, tile_n),)

    b_2d = b3.reshape(1, d_out).astype(jnp.float32)

    out = pl.pallas_call(
        _linear_sigmoid_kernel,
        out_shape=jax.ShapeDtypeStruct((n, d_out), x.dtype),
        grid=grid,
        in_specs=[
            # x streams over the row grid axis (double-buffered by Pallas).
            # TODO(synk): pipeline_mode=pl.Buffered(3) is an optional further
            # tweak to hide HBM latency jitter; left at the default depth.
            pl.BlockSpec((tile_n, d_in), lambda i: (i, 0)),
            # Weights / bias: constant index_map -> DMA'd once, VMEM-resident.
            # Block == full array dims, so the small d_out needs no padding.
            pl.BlockSpec((d_in, d_out), lambda i: (0, 0)),
            pl.BlockSpec((1, d_out), lambda i: (0, 0)),
        ],
        out_specs=pl.BlockSpec((tile_n, d_out), lambda i: (i, 0)),
        compiler_params=pltpu.CompilerParams(
            dimension_semantics=("parallel",)),
        cost_estimate=pl.CostEstimate(
            flops=2 * n * d_in * d_out,
            transcendentals=n * d_out,
            bytes_accessed=(x_in.dtype.itemsize * n * d_in
                            + w_in.dtype.itemsize * d_in * d_out
                            + x.dtype.itemsize * n * d_out)),
    )(x_in, w_in, b_2d)

    return out, x


if __name__ == "__main__":
    key = jax.random.PRNGKey(0)
    k_x, k_w, k_b = jax.random.split(key, 3)

    N = 8            # number of graph nodes (small)
    D_IN = 384       # fixed by the module (linear3 in_features)
    OUT_CHANNELS = 16

    # Node features (edge_index / edge_weight are unused by forward).
    x = jax.random.normal(k_x, (N, D_IN), dtype=jnp.float32)

    # Deterministic PyTorch-style Linear init: U(-1/sqrt(fan_in), 1/sqrt(fan_in)).
    bound = 1.0 / (D_IN ** 0.5)
    w3 = jax.random.uniform(k_w, (D_IN, OUT_CHANNELS), jnp.float32, -bound, bound)
    b3 = jax.random.uniform(k_b, (OUT_CHANNELS,), jnp.float32, -bound, bound)

    ref = jax.nn.sigmoid(x @ w3 + b3)

    # 1) Default path at N=8 -> small-N XLA fallback.
    out, y = mlp_forward(x, w3, b3)
    jax.block_until_ready((out, y))
    assert out.shape == (N, OUT_CHANNELS)
    assert y.shape == (N, D_IN)
    assert jnp.allclose(out, ref, atol=1e-5), "mismatch vs reference (fallback)"
    assert jnp.array_equal(y, x), "passthrough y must equal input x (fallback)"

    # 2) Force the Pallas path on the same small input (single-tile grid).
    out_p, y_p = mlp_forward(x, w3, b3, min_rows_for_pallas=0)
    jax.block_until_ready((out_p, y_p))
    assert jnp.allclose(out_p, ref, atol=1e-5), "mismatch vs reference (pallas small N)"
    assert jnp.array_equal(y_p, x), "passthrough y must equal input x (pallas small N)"

    # 3) Larger N: exercises the tiled grid + ragged last block (no padding copies).
    N2 = 2500
    x2 = jax.random.normal(jax.random.PRNGKey(1), (N2, D_IN), dtype=jnp.float32)
    out2, y2 = mlp_forward(x2, w3, b3)
    jax.block_until_ready((out2, y2))
    ref2 = jax.nn.sigmoid(x2 @ w3 + b3)
    assert out2.shape == (N2, OUT_CHANNELS)
    assert jnp.allclose(out2, ref2, atol=1e-5), "mismatch vs reference (tiled N)"
    assert jnp.array_equal(y2, x2), "passthrough y must equal input x (tiled N)"

    print("KERNEL_OK")
</pallas_src>

<mosaic_0001>
module attributes {stable_mosaic.version = 11 : i64} {
  func.func @_linear_sigmoid_kernel(%arg0: i32, %arg1: memref<8x384xf32, #tpu.memory_space<vmem>>, %arg2: memref<384x16xf32, #tpu.memory_space<vmem>>, %arg3: memref<1x16xf32, #tpu.memory_space<vmem>>, %arg4: memref<8x16xf32, #tpu.memory_space<vmem>>) attributes {dimension_semantics = [#tpu.dimension_semantics<parallel>], iteration_bounds = array<i64: 1>, scalar_prefetch = 0 : i64, scratch_operands = 0 : i64, tpu.core_type = #tpu.core_type<tc>, window_params = [{transform_indices = @transform_0, window_bounds = array<i64: 8, 384>}, {pipeline_mode = #tpu.pipeline_mode<synchronous>, transform_indices = @transform_1, window_bounds = array<i64: 384, 16>}, {pipeline_mode = #tpu.pipeline_mode<synchronous>, transform_indices = @transform_2, window_bounds = array<i64: 1, 16>}, {transform_indices = @transform_3, window_bounds = array<i64: 8, 16>}]} {
    %c0 = arith.constant 0 : index
    %c0_0 = arith.constant 0 : index
    %0 = vector.load %arg1[%c0, %c0_0] : memref<8x384xf32, #tpu.memory_space<vmem>>, vector<8x384xf32>
    %c0_1 = arith.constant 0 : index
    %c0_2 = arith.constant 0 : index
    %1 = vector.load %arg2[%c0_1, %c0_2] : memref<384x16xf32, #tpu.memory_space<vmem>>, vector<384x16xf32>
    %cst = arith.constant dense<0.000000e+00> : vector<8x16xf32>
    %2 = tpu.matmul %0, %1, %cst {dimension_numbers = #tpu.dot_dimension_numbers<[1], [0], [0], [1], [0, 0, 1, 1], [], []>} : vector<8x384xf32>, vector<384x16xf32>, vector<8x16xf32> -> vector<8x16xf32>
    %c0_3 = arith.constant 0 : index
    %c0_4 = arith.constant 0 : index
    %3 = vector.load %arg3[%c0_3, %c0_4] : memref<1x16xf32, #tpu.memory_space<vmem>>, vector<1x16xf32>
    %4 = vector.broadcast %3 : vector<1x16xf32> to vector<8x16xf32>
    %5 = arith.addf %2, %4 : vector<8x16xf32>
    %cst_5 = arith.constant 5.000000e-01 : f32
    %6 = vector.broadcast %cst_5 : f32 to vector<8x16xf32>
    %7 = arith.mulf %6, %5 : vector<8x16xf32>
    %8 = math.tanh %7 : vector<8x16xf32>
    %cst_6 = arith.constant 1.000000e+00 : f32
    %9 = vector.broadcast %cst_6 : f32 to vector<8x16xf32>
    %10 = arith.addf %8, %9 : vector<8x16xf32>
    %cst_7 = arith.constant 5.000000e-01 : f32
    %11 = vector.broadcast %cst_7 : f32 to vector<8x16xf32>
    %12 = arith.mulf %11, %10 : vector<8x16xf32>
    %c0_8 = arith.constant 0 : index
    %c0_9 = arith.constant 0 : index
    %13 = vector.load %arg4[%c0_8, %c0_9] : memref<8x16xf32, #tpu.memory_space<vmem>>, vector<8x16xf32>
    tpu.vector_store %arg4[%c0_8, %c0_9], %12 {strides = array<i32>} : memref<8x16xf32, #tpu.memory_space<vmem>>, vector<8x16xf32>,
    return
  }
  func.func @transform_0(%arg0: i32) -> (i32, i32) {
    %c0_i32 = arith.constant 0 : i32
    %c0_i32_0 = arith.constant 0 : i32
    return %arg0, %c0_i32 : i32, i32
  }
  func.func @transform_1(%arg0: i32) -> (i32, i32) {
    %c0_i32 = arith.constant 0 : i32
    %c0_i32_0 = arith.constant 0 : i32
    %c0_i32_1 = arith.constant 0 : i32
    return %c0_i32, %c0_i32_0 : i32, i32
  }
  func.func @transform_2(%arg0: i32) -> (i32, i32) {
    %c0_i32 = arith.constant 0 : i32
    %c0_i32_0 = arith.constant 0 : i32
    %c0_i32_1 = arith.constant 0 : i32
    return %c0_i32, %c0_i32_0 : i32, i32
  }
  func.func @transform_3(%arg0: i32) -> (i32, i32) {
    %c0_i32 = arith.constant 0 : i32
    %c0_i32_0 = arith.constant 0 : i32
    return %arg0, %c0_i32 : i32, i32
  }
}

</mosaic_0001>

<llo_original>
// kernel: tpu_custom_call.1
$region0: #{tpu_custom_call.1}
  #allocation0 [shape = 'u32[]', space=smem, size = 0x4, offset = 0x4, fixed_abs, tag = 'smem constant byte address 0x4 - core index']
  #allocation1 [shape = 'u32[72,128]{1,0:T(1,128)}', space=vmem, size = 0x9000, scoped, tag = 'internal scratch']
  %s0 = inlined_call_operand.vmem [shape: f32[8,384], index: 0, kind: input, shape index: {}]
  %s1 = inlined_call_operand.vmem [shape: f32[384,16], index: 1, kind: input, shape index: {}]
  %s2 = inlined_call_operand.vmem [shape: f32[1,16], index: 2, kind: input, shape index: {}]
  %s3 = inlined_call_operand.hbm [shape: f32[8,16], index: 3, kind: output, shape index: {}]
  %s4 = sld [smem:[#allocation0]]
  $region22: #{tpu_custom_call.1} parent=0
    _
  %s6 = ssub.s32 1, %s4
  %s7 = scalar_select 0, %s6, %s4
  $region1: #{tpu_custom_call.1} parent=0
    #allocation2 [shape = 'u8[4096]{0}', space=vmem, size = 0x1000, scoped, tag = 'output window, operand 0, single buffered']
    #allocation3 [shape = 's32[1]{0}', space=sflag, size = 0x4, scoped, tag = 'scoped memory for tpu_custom_call.1']
    %8 = vsyncpa [#allocation3], 0
    // Predicated region
    $region2: #{tpu_custom_call.1} parent=1 // pred_check
      _
    $region3: #{tpu_custom_call.1} parent=1 // pred_check_branch
      %10 = sbr.rel (0) target = $region5
    $region4: #{tpu_custom_call.1} parent=1 // pred_region
      _
    $region5: #{tpu_custom_call.1} parent=1 // pred_fallthru
      _
    // Predicated region
    $region6: #{tpu_custom_call.1} parent=1 // pred_check
      _
    $region7: #{tpu_custom_call.1} parent=1 // pred_check_branch
      %12 = sbr.rel (0) target = $region9
    $region8: #{tpu_custom_call.1} parent=1 // pred_region
      _
    $region9: #{tpu_custom_call.1} parent=1 // pred_fallthru
      _
    // Predicated region
    $region10: #{tpu_custom_call.1} parent=1 // pred_check
      _
    $region11: #{tpu_custom_call.1} parent=1 // pred_check_branch
      %14 = sbr.rel (0) target = $region13
    $region12: #{tpu_custom_call.1} parent=1 // pred_region
      _
    $region13: #{tpu_custom_call.1} parent=1 // pred_fallthru
      _
    %v15 = vld [vmem:[%s0] sm:$0xff]
    %v16 = vld [vmem:[%s0 + $0x8] sm:$0xff]
    %v17 = vld [vmem:[%s0 + $0x10] sm:$0xff]
    %v18 = vld [vmem:[%s1] sm:$0xff]
    %v19 = vld [vmem:[%s1 + $0x8] sm:$0xff]
    %v20 = vld [vmem:[%s1 + $0x10] sm:$0xff]
    %v21 = vld [vmem:[%s1 + $0x18] sm:$0xff]
    %v22 = vld [vmem:[%s1 + $0x20] sm:$0xff]
    %v23 = vld [vmem:[%s1 + $0x28] sm:$0xff]
    %v24 = vld [vmem:[%s1 + $0x30] sm:$0xff]
    %v25 = vld [vmem:[%s1 + $0x38] sm:$0xff]
    %v26 = vld [vmem:[%s1 + $0x40] sm:$0xff]
    %v27 = vld [vmem:[%s1 + $0x48] sm:$0xff]
    %v28 = vld [vmem:[%s1 + $0x50] sm:$0xff]
    %v29 = vld [vmem:[%s1 + $0x58] sm:$0xff]
    %v30 = vld [vmem:[%s1 + $0x60] sm:$0xff]
    %v31 = vld [vmem:[%s1 + $0x68] sm:$0xff]
    %v32 = vld [vmem:[%s1 + $0x70] sm:$0xff]
    %v33 = vld [vmem:[%s1 + $0x78] sm:$0xff]
    %v34 = vld [vmem:[%s1 + $0x80] sm:$0xff]
    %v35 = vld [vmem:[%s1 + $0x88] sm:$0xff]
    %v36 = vld [vmem:[%s1 + $0x90] sm:$0xff]
    %v37 = vld [vmem:[%s1 + $0x98] sm:$0xff]
    %v38 = vld [vmem:[%s1 + $0xa0] sm:$0xff]
    %v39 = vld [vmem:[%s1 + $0xa8] sm:$0xff]
    %v40 = vld [vmem:[%s1 + $0xb0] sm:$0xff]
    %v41 = vld [vmem:[%s1 + $0xb8] sm:$0xff]
    %v42 = vld [vmem:[%s1 + $0xc0] sm:$0xff]
    %v43 = vld [vmem:[%s1 + $0xc8] sm:$0xff]
    %v44 = vld [vmem:[%s1 + $0xd0] sm:$0xff]
    %v45 = vld [vmem:[%s1 + $0xd8] sm:$0xff]
    %v46 = vld [vmem:[%s1 + $0xe0] sm:$0xff]
    %v47 = vld [vmem:[%s1 + $0xe8] sm:$0xff]
    %v48 = vld [vmem:[%s1 + $0xf0] sm:$0xff]
    %v49 = vld [vmem:[%s1 + $0xf8] sm:$0xff]
    %v50 = vld [vmem:[%s1 + $0x100] sm:$0xff]
    %v51 = vld [vmem:[%s1 + $0x108] sm:$0xff]
    %v52 = vld [vmem:[%s1 + $0x110] sm:$0xff]
    %v53 = vld [vmem:[%s1 + $0x118] sm:$0xff]
    %v54 = vld [vmem:[%s1 + $0x120] sm:$0xff]
    %v55 = vld [vmem:[%s1 + $0x128] sm:$0xff]
    %v56 = vld [vmem:[%s1 + $0x130] sm:$0xff]
    %v57 = vld [vmem:[%s1 + $0x138] sm:$0xff]
    %v58 = vld [vmem:[%s1 + $0x140] sm:$0xff]
    %v59 = vld [vmem:[%s1 + $0x148] sm:$0xff]
    %v60 = vld [vmem:[%s1 + $0x150] sm:$0xff]
    %v61 = vld [vmem:[%s1 + $0x158] sm:$0xff]
    %v62 = vld [vmem:[%s1 + $0x160] sm:$0xff]
    %v63 = vld [vmem:[%s1 + $0x168] sm:$0xff]
    %v64 = vld [vmem:[%s1 + $0x170] sm:$0xff]
    %v65 = vld [vmem:[%s1 + $0x178] sm:$0xff]
    %v66 = vld [vmem:[%s2] sm:$0x1]
    %v68 = vperm.slane %v66, 0
    %70 = vmatpush.msra.mxu0 %v33
    %71 = vmatpush.msra.mxu0 %v32
    %72 = vmatpush.msra.mxu0 %v31
    %73 = vmatpush.msra.mxu0 %v30
    %74 = vmatpush.msra.mxu0 %v29
    %75 = vmatpush.msra.mxu0 %v28
    %76 = vmatpush.msra.mxu0 %v27
    %77 = vmatpush.msra.mxu0 %v26
    %78 = vmatpush.msra.mxu0 %v25
    %79 = vmatpush.msra.mxu0 %v24
    %80 = vmatpush.msra.mxu0 %v23
    %81 = vmatpush.msra.mxu0 %v22
    %82 = vmatpush.msra.mxu0 %v21
    %83 = vmatpush.msra.mxu0 %v20
    %84 = vmatpush.msra.mxu0 %v19
    %85 = vmatpush.msra.mxu0 %v18
    %86 = vmatmul.f32.gmra.mxu0 %v15
    %v87 = vpop.f32.mrf.mxu0
    %v88 = vadd.f32 %v68, %v87
    %89 = vdwg.mxu0
    %90 = vmatpush.msra.mxu0 %v49
    %91 = vmatpush.msra.mxu0 %v48
    %92 = vmatpush.msra.mxu0 %v47
    %93 = vmatpush.msra.mxu0 %v46
    %94 = vmatpush.msra.mxu0 %v45
    %95 = vmatpush.msra.mxu0 %v44
    %96 = vmatpush.msra.mxu0 %v43
    %97 = vmatpush.msra.mxu0 %v42
    %98 = vmatpush.msra.mxu0 %v41
    %99 = vmatpush.msra.mxu0 %v40
    %100 = vmatpush.msra.mxu0 %v39
    %101 = vmatpush.msra.mxu0 %v38
    %102 = vmatpush.msra.mxu0 %v37
    %103 = vmatpush.msra.mxu0 %v36
    %104 = vmatpush.msra.mxu0 %v35
    %105 = vmatpush.msra.mxu0 %v34
    %106 = vmatmul.f32.gmra.mxu0 %v16
    %v107 = vpop.f32.mrf.mxu0
    %v108 = vadd.f32 %v88, %v107
    %109 = vdwg.mxu0
    %110 = vmatpush.msra.mxu0 %v65
    %111 = vmatpush.msra.mxu0 %v64
    %112 = vmatpush.msra.mxu0 %v63
    %113 = vmatpush.msra.mxu0 %v62
    %114 = vmatpush.msra.mxu0 %v61
    %115 = vmatpush.msra.mxu0 %v60
    %116 = vmatpush.msra.mxu0 %v59
    %117 = vmatpush.msra.mxu0 %v58
    %118 = vmatpush.msra.mxu0 %v57
    %119 = vmatpush.msra.mxu0 %v56
    %120 = vmatpush.msra.mxu0 %v55
    %121 = vmatpush.msra.mxu0 %v54
    %122 = vmatpush.msra.mxu0 %v53
    %123 = vmatpush.msra.mxu0 %v52
    %124 = vmatpush.msra.mxu0 %v51
    %125 = vmatpush.msra.mxu0 %v50
    %126 = vmatmul.f32.gmra.mxu0 %v17
    %v127 = vpop.f32.mrf.mxu0
    %v128 = vadd.f32 %v108, %v127
    %129 = vdwg.mxu0
    %v130 = vmul.f32 %v128, 0.5
    %v131 = vtanh.pop %v130
    %v132 = vadd.f32 %v131, 1.0
    %v133 = vmul.f32 %v132, 0.5
    %vm134 = vcmask 130048
    %135 = vst.msk [vmem:[#allocation2] sm:$0xff] %vm134, %v133
    // Predicated region
    $region14: #{tpu_custom_call.1} parent=1 // pred_check
      _
    $region15: #{tpu_custom_call.1} parent=1 // pred_check_branch
      %137 = sbr.rel (0) target = $region17
    $region16: #{tpu_custom_call.1} parent=1 // pred_region
      %139 = vsyncadd [#allocation3], 0
      %s141 = sshll.u32 [#allocation2], 4
      %s142 = int_to_ptr.vmem [resolvable:$true] %s141
      %s143 = sshll.u32 %s3, 4
      %s144 = int_to_ptr.hbm [resolvable:$true] %s143
      %146 = dma.vmem_to_hbm [thread:$0]  %s142, 128, %s144, [#allocation3]
    $region17: #{tpu_custom_call.1} parent=1 // pred_fallthru
      _
    // Predicated region
    $region18: #{tpu_custom_call.1} parent=1 // pred_check
      _
    $region19: #{tpu_custom_call.1} parent=1 // pred_check_branch
      %148 = sbr.rel (0) target = $region21
    $region20: #{tpu_custom_call.1} parent=1 // pred_region
      %150 = dma.done [#allocation3], 128
    $region21: #{tpu_custom_call.1} parent=1 // pred_fallthru
      _
    %151 = vsyncpa [#allocation3], 1

</llo_original>
